<compile_context>
chip_gen: v5e
topology: v5e:2x2
jax: 0.10.0
libtpu: 0.0.40
codegen_flags: <defaults>
</compile_context>

<pallas_src>
import functools

import jax
import jax.numpy as jnp
import numpy as np
from jax import lax
from jax.experimental import pallas as pl
from jax.experimental.pallas import tpu as pltpu


# ----------------------------------------------------------------------------
# Pass 1: 3x3 conv (single im2col matmul) + per-image BN sum / sum-of-squares.
# ----------------------------------------------------------------------------
def _conv_stats_kernel(x_ref, w_ref, mask_ref, o_ref, sum_ref, ssq_ref,
                       patches_ref, *, H, W, Cin):
    # x_ref:       (1, Cin, (H+3)*(W+2))  zero-padded, row-flattened image
    # w_ref:       (Cout, 9*Cin)          weights, column order (dy, dx, cin)
    # mask_ref:    (1, H*(W+2))           1.0 on valid output columns, else 0.0
    # o_ref:       (1, Cout, H*(W+2))     raw conv output (wide rows)
    # sum_ref:     (1, Cout, 1)           per-image per-channel sum
    # ssq_ref:     (1, Cout, 1)           per-image per-channel sum of squares
    # patches_ref: VMEM scratch (9*Cin, H*(W+2)) im2col patch matrix
    Wp = W + 2
    Qe = H * Wp

    # im2col: nine shifted views of the flattened padded image, stacked along
    # the contraction (sublane) axis.  Static slices, no concatenate/reshape.
    for k in range(9):
        dy, dx = divmod(k, 3)
        off = dy * Wp + dx
        patches_ref[k * Cin:(k + 1) * Cin, :] = x_ref[0, :, off:off + Qe]

    # One MXU matmul, K = 9*Cin (was nine K=Cin matmuls).
    acc = jnp.dot(w_ref[...], patches_ref[...],
                  preferred_element_type=jnp.float32)          # (Cout, Qe)

    # BN statistics over the valid columns only (each flattened row of length
    # W+2 carries 2 junk columns that are discarded by the wrapper).
    valid = acc * mask_ref[...]
    sum_ref[0] = jnp.sum(valid, axis=1, keepdims=True)          # (Cout, 1)
    ssq_ref[0] = jnp.sum(valid * valid, axis=1, keepdims=True)  # (Cout, 1)

    # Lane-dense store: channels on sublanes, 288 spatial positions on lanes.
    o_ref[0] = acc


# ----------------------------------------------------------------------------
# Pass 2: folded BatchNorm (per-channel scale/shift) + LeakyReLU(0.2).
# ----------------------------------------------------------------------------
def _bn_lrelu_kernel(y_ref, scale_ref, shift_ref, o_ref, *, slope):
    # y_ref: (1, Cout, Qe); scale/shift: (Cout, 1); o_ref: (1, Cout, Qe)
    z = y_ref[0] * scale_ref[...] + shift_ref[...]
    o_ref[0] = jnp.maximum(z, slope * z)


def conv_block2_forward(x_nchw, w_oihw, bias, gamma, beta, eps=1e-5, slope=0.2):
    """Pallas implementation of conv_block2.forward.  Input/output are NCHW."""
    N, Cin, H, W = x_nchw.shape
    Cout = w_oihw.shape[0]
    Wp = W + 2                    # padded row width
    Qe = H * Wp                   # extended (wide-row) output length per image
    flat_pad = (H + 3) * Wp       # 1 top + 2 bottom pad rows so the deepest tap
                                  # (offset 2*Wp+2 past the last junk column)
                                  # stays in range.

    x = x_nchw.astype(jnp.float32)
    # Only glue op touching the activation: zero-pad and (free) flatten.
    xpad = jnp.pad(x, ((0, 0), (0, 0), (1, 2), (1, 1)))
    xflat = xpad.reshape(N, Cin, flat_pad)

    # Weights OIHW -> (Cout, 9*Cin); column order (dy, dx, cin) matches im2col.
    w_mat = jnp.transpose(w_oihw.astype(jnp.float32),
                          (0, 2, 3, 1)).reshape(Cout, 9 * Cin)

    # Conv bias is intentionally unused: a per-channel additive bias cancels
    # exactly when training-mode BatchNorm subtracts the batch mean.
    del bias

    # Validity mask: in each flattened row of length W+2 only the first W
    # columns are real conv outputs.
    q = jnp.arange(Qe, dtype=jnp.int32)
    mask = ((q % Wp) < W).astype(jnp.float32).reshape(1, Qe)

    kernel1 = functools.partial(_conv_stats_kernel, H=H, W=W, Cin=Cin)
    conv_ext, sums, ssqs = pl.pallas_call(
        kernel1,
        grid=(N,),
        in_specs=[
            pl.BlockSpec((1, Cin, flat_pad), lambda n: (n, 0, 0)),
            pl.BlockSpec((Cout, 9 * Cin), lambda n: (0, 0)),
            pl.BlockSpec((1, Qe), lambda n: (0, 0)),
        ],
        out_specs=(
            pl.BlockSpec((1, Cout, Qe), lambda n: (n, 0, 0)),
            pl.BlockSpec((1, Cout, 1), lambda n: (n, 0, 0)),
            pl.BlockSpec((1, Cout, 1), lambda n: (n, 0, 0)),
        ),
        out_shape=(
            jax.ShapeDtypeStruct((N, Cout, Qe), jnp.float32),
            jax.ShapeDtypeStruct((N, Cout, 1), jnp.float32),
            jax.ShapeDtypeStruct((N, Cout, 1), jnp.float32),
        ),
        scratch_shapes=[pltpu.VMEM((9 * Cin, Qe), jnp.float32)],
        compiler_params=pltpu.CompilerParams(
            dimension_semantics=("parallel",),
            vmem_limit_bytes=32 * 1024 * 1024),
    )(xflat, w_mat, mask)

    # Fold BN into per-channel scale/shift (O(Cout) glue, negligible).
    count = jnp.float32(N * H * W)
    mean = jnp.sum(sums, axis=(0, 2)) / count
    ex2 = jnp.sum(ssqs, axis=(0, 2)) / count
    var = jnp.maximum(ex2 - mean * mean, 0.0)      # biased variance (training BN)
    scale = gamma.astype(jnp.float32) * lax.rsqrt(var + eps)
    shift = beta.astype(jnp.float32) - mean * scale
    scale_col = scale.reshape(Cout, 1)
    shift_col = shift.reshape(Cout, 1)

    kernel2 = functools.partial(_bn_lrelu_kernel, slope=slope)
    out_ext = pl.pallas_call(
        kernel2,
        grid=(N,),
        in_specs=[
            pl.BlockSpec((1, Cout, Qe), lambda n: (n, 0, 0)),
            pl.BlockSpec((Cout, 1), lambda n: (0, 0)),
            pl.BlockSpec((Cout, 1), lambda n: (0, 0)),
        ],
        out_specs=pl.BlockSpec((1, Cout, Qe), lambda n: (n, 0, 0)),
        out_shape=jax.ShapeDtypeStruct((N, Cout, Qe), jnp.float32),
        compiler_params=pltpu.CompilerParams(
            dimension_semantics=("parallel",),
            vmem_limit_bytes=32 * 1024 * 1024),
    )(conv_ext, scale_col, shift_col)

    # Drop the 2 junk pad columns per row; result is already NCHW.
    return out_ext.reshape(N, Cout, H, Wp)[:, :, :, :W]


def _reference(x_nchw, w_oihw, bias, gamma, beta, eps=1e-5, slope=0.2):
    """Pure-JAX reference matching PyTorch semantics (training-mode BN)."""
    out = lax.conv_general_dilated(
        x_nchw, w_oihw, window_strides=(1, 1), padding=((1, 1), (1, 1)),
        dimension_numbers=('NCHW', 'OIHW', 'NCHW'))
    out = out + bias[None, :, None, None]
    mean = out.mean(axis=(0, 2, 3), keepdims=True)
    var = ((out - mean) ** 2).mean(axis=(0, 2, 3), keepdims=True)
    y = (out - mean) / jnp.sqrt(var + eps)
    y = y * gamma[None, :, None, None] + beta[None, :, None, None]
    return jnp.where(y >= 0, y, slope * y)


if __name__ == "__main__":
    # Small shapes consistent with the module: N=2, input_nc=4, output_nc=8, 16x16.
    N, Cin, Cout, H, W = 2, 4, 8, 16, 16

    key = jax.random.PRNGKey(0)
    kx, kw, kb, kg, kbe = jax.random.split(key, 5)

    x = jax.random.normal(kx, (N, Cin, H, W), dtype=jnp.float32)
    w = jax.random.normal(kw, (Cout, Cin, 3, 3), dtype=jnp.float32) * 0.1
    b = jax.random.normal(kb, (Cout,), dtype=jnp.float32) * 0.1
    gamma = 1.0 + 0.1 * jax.random.normal(kg, (Cout,), dtype=jnp.float32)
    beta = 0.1 * jax.random.normal(kbe, (Cout,), dtype=jnp.float32)

    fwd = jax.jit(conv_block2_forward)
    out = jax.block_until_ready(fwd(x, w, b, gamma, beta))

    ref = _reference(x, w, b, gamma, beta)
    np.testing.assert_allclose(np.asarray(out), np.asarray(ref),
                               rtol=2e-4, atol=2e-4)

    print("KERNEL_OK")
</pallas_src>

<mosaic_0001>
module attributes {stable_mosaic.version = 11 : i64} {
  func.func @_bn_lrelu_kernel(%arg0: i32, %arg1: memref<1x8x288xf32, #tpu.memory_space<vmem>>, %arg2: memref<8x1xf32, #tpu.memory_space<vmem>>, %arg3: memref<8x1xf32, #tpu.memory_space<vmem>>, %arg4: memref<1x8x288xf32, #tpu.memory_space<vmem>>) attributes {dimension_semantics = [#tpu.dimension_semantics<parallel>], iteration_bounds = array<i64: 2>, scalar_prefetch = 0 : i64, scratch_operands = 0 : i64, tpu.core_type = #tpu.core_type<tc>, window_params = [{transform_indices = @transform_0, window_bounds = array<i64: 1, 8, 288>}, {pipeline_mode = #tpu.pipeline_mode<synchronous>, transform_indices = @transform_1, window_bounds = array<i64: 8, 1>}, {pipeline_mode = #tpu.pipeline_mode<synchronous>, transform_indices = @transform_2, window_bounds = array<i64: 8, 1>}, {transform_indices = @transform_3, window_bounds = array<i64: 1, 8, 288>}]} {
    %c0 = arith.constant 0 : index
    %c0_0 = arith.constant 0 : index
    %c0_1 = arith.constant 0 : index
    %0 = vector.load %arg1[%c0, %c0_0, %c0_1] : memref<1x8x288xf32, #tpu.memory_space<vmem>>, vector<1x8x288xf32>
    %1 = vector.shape_cast %0 : vector<1x8x288xf32> to vector<8x288xf32>
    %c0_2 = arith.constant 0 : index
    %c0_3 = arith.constant 0 : index
    %2 = vector.load %arg2[%c0_2, %c0_3] : memref<8x1xf32, #tpu.memory_space<vmem>>, vector<8x1xf32>
    %3 = vector.broadcast %2 : vector<8x1xf32> to vector<8x288xf32>
    %4 = arith.mulf %1, %3 : vector<8x288xf32>
    %c0_4 = arith.constant 0 : index
    %c0_5 = arith.constant 0 : index
    %5 = vector.load %arg3[%c0_4, %c0_5] : memref<8x1xf32, #tpu.memory_space<vmem>>, vector<8x1xf32>
    %6 = vector.broadcast %5 : vector<8x1xf32> to vector<8x288xf32>
    %7 = arith.addf %4, %6 : vector<8x288xf32>
    %cst = arith.constant 2.000000e-01 : f32
    %8 = vector.broadcast %cst : f32 to vector<8x288xf32>
    %9 = arith.mulf %8, %7 : vector<8x288xf32>
    %10 = arith.maximumf %7, %9 : vector<8x288xf32>
    %c0_6 = arith.constant 0 : index
    %c0_7 = arith.constant 0 : index
    %c0_8 = arith.constant 0 : index
    %11 = vector.load %arg4[%c0_6, %c0_7, %c0_8] : memref<1x8x288xf32, #tpu.memory_space<vmem>>, vector<1x8x288xf32>
    %12 = vector.shape_cast %11 : vector<1x8x288xf32> to vector<8x288xf32>
    %13 = vector.shape_cast %10 : vector<8x288xf32> to vector<1x8x288xf32>
    tpu.vector_store %arg4[%c0_6, %c0_7, %c0_8], %13 {strides = array<i32>} : memref<1x8x288xf32, #tpu.memory_space<vmem>>, vector<1x8x288xf32>,
    return
  }
  func.func @transform_0(%arg0: i32) -> (i32, i32, i32) {
    %c0_i32 = arith.constant 0 : i32
    %c0_i32_0 = arith.constant 0 : i32
    %c0_i32_1 = arith.constant 0 : i32
    return %arg0, %c0_i32, %c0_i32_0 : i32, i32, i32
  }
  func.func @transform_1(%arg0: i32) -> (i32, i32) {
    %c0_i32 = arith.constant 0 : i32
    %c0_i32_0 = arith.constant 0 : i32
    %c0_i32_1 = arith.constant 0 : i32
    return %c0_i32, %c0_i32_0 : i32, i32
  }
  func.func @transform_2(%arg0: i32) -> (i32, i32) {
    %c0_i32 = arith.constant 0 : i32
    %c0_i32_0 = arith.constant 0 : i32
    %c0_i32_1 = arith.constant 0 : i32
    return %c0_i32, %c0_i32_0 : i32, i32
  }
  func.func @transform_3(%arg0: i32) -> (i32, i32, i32) {
    %c0_i32 = arith.constant 0 : i32
    %c0_i32_0 = arith.constant 0 : i32
    %c0_i32_1 = arith.constant 0 : i32
    return %arg0, %c0_i32, %c0_i32_0 : i32, i32, i32
  }
}

module attributes {stable_mosaic.version = 11 : i64} {
  func.func @_conv_stats_kernel(%arg0: i32, %arg1: memref<1x4x342xf32, #tpu.memory_space<vmem>>, %arg2: memref<8x36xf32, #tpu.memory_space<vmem>>, %arg3: memref<1x288xf32, #tpu.memory_space<vmem>>, %arg4: memref<1x8x288xf32, #tpu.memory_space<vmem>>, %arg5: memref<1x8x1xf32, #tpu.memory_space<vmem>>, %arg6: memref<1x8x1xf32, #tpu.memory_space<vmem>>, %arg7: memref<36x288xf32, #tpu.memory_space<vmem>>) attributes {dimension_semantics = [#tpu.dimension_semantics<parallel>], iteration_bounds = array<i64: 2>, scalar_prefetch = 0 : i64, scratch_operands = 1 : i64, tpu.core_type = #tpu.core_type<tc>, window_params = [{transform_indices = @transform_0, window_bounds = array<i64: 1, 4, 342>}, {pipeline_mode = #tpu.pipeline_mode<synchronous>, transform_indices = @transform_1, window_bounds = array<i64: 8, 36>}, {pipeline_mode = #tpu.pipeline_mode<synchronous>, transform_indices = @transform_2, window_bounds = array<i64: 1, 288>}, {transform_indices = @transform_3, window_bounds = array<i64: 1, 8, 288>}, {transform_indices = @transform_4, window_bounds = array<i64: 1, 8, 1>}, {transform_indices = @transform_5, window_bounds = array<i64: 1, 8, 1>}]} {
    %c0 = arith.constant 0 : index
    %c0_0 = arith.constant 0 : index
    %c0_1 = arith.constant 0 : index
    %0 = vector.load %arg1[%c0, %c0_0, %c0_1] : memref<1x4x342xf32, #tpu.memory_space<vmem>>, vector<1x4x288xf32>
    %1 = vector.shape_cast %0 : vector<1x4x288xf32> to vector<4x288xf32>
    %c0_2 = arith.constant 0 : index
    %c0_3 = arith.constant 0 : index
    %2 = vector.load %arg7[%c0_2, %c0_3] : memref<36x288xf32, #tpu.memory_space<vmem>>, vector<4x288xf32>
    tpu.vector_store %arg7[%c0_2, %c0_3], %1 {strides = array<i32>} : memref<36x288xf32, #tpu.memory_space<vmem>>, vector<4x288xf32>,
    %c0_4 = arith.constant 0 : index
    %c0_5 = arith.constant 0 : index
    %c1 = arith.constant 1 : index
    %3 = vector.load %arg1[%c0_4, %c0_5, %c1] : memref<1x4x342xf32, #tpu.memory_space<vmem>>, vector<1x4x288xf32>
    %4 = vector.shape_cast %3 : vector<1x4x288xf32> to vector<4x288xf32>
    %c4 = arith.constant 4 : index
    %c0_6 = arith.constant 0 : index
    %5 = vector.load %arg7[%c4, %c0_6] : memref<36x288xf32, #tpu.memory_space<vmem>>, vector<4x288xf32>
    tpu.vector_store %arg7[%c4, %c0_6], %4 {strides = array<i32>} : memref<36x288xf32, #tpu.memory_space<vmem>>, vector<4x288xf32>,
    %c0_7 = arith.constant 0 : index
    %c0_8 = arith.constant 0 : index
    %c2 = arith.constant 2 : index
    %6 = vector.load %arg1[%c0_7, %c0_8, %c2] : memref<1x4x342xf32, #tpu.memory_space<vmem>>, vector<1x4x288xf32>
    %7 = vector.shape_cast %6 : vector<1x4x288xf32> to vector<4x288xf32>
    %c8 = arith.constant 8 : index
    %c0_9 = arith.constant 0 : index
    %8 = vector.load %arg7[%c8, %c0_9] : memref<36x288xf32, #tpu.memory_space<vmem>>, vector<4x288xf32>
    tpu.vector_store %arg7[%c8, %c0_9], %7 {strides = array<i32>} : memref<36x288xf32, #tpu.memory_space<vmem>>, vector<4x288xf32>,
    %c0_10 = arith.constant 0 : index
    %c0_11 = arith.constant 0 : index
    %c18 = arith.constant 18 : index
    %9 = vector.load %arg1[%c0_10, %c0_11, %c18] : memref<1x4x342xf32, #tpu.memory_space<vmem>>, vector<1x4x288xf32>
    %10 = vector.shape_cast %9 : vector<1x4x288xf32> to vector<4x288xf32>
    %c12 = arith.constant 12 : index
    %c0_12 = arith.constant 0 : index
    %11 = vector.load %arg7[%c12, %c0_12] : memref<36x288xf32, #tpu.memory_space<vmem>>, vector<4x288xf32>
    tpu.vector_store %arg7[%c12, %c0_12], %10 {strides = array<i32>} : memref<36x288xf32, #tpu.memory_space<vmem>>, vector<4x288xf32>,
    %c0_13 = arith.constant 0 : index
    %c0_14 = arith.constant 0 : index
    %c19 = arith.constant 19 : index
    %12 = vector.load %arg1[%c0_13, %c0_14, %c19] : memref<1x4x342xf32, #tpu.memory_space<vmem>>, vector<1x4x288xf32>
    %13 = vector.shape_cast %12 : vector<1x4x288xf32> to vector<4x288xf32>
    %c16 = arith.constant 16 : index
    %c0_15 = arith.constant 0 : index
    %14 = vector.load %arg7[%c16, %c0_15] : memref<36x288xf32, #tpu.memory_space<vmem>>, vector<4x288xf32>
    tpu.vector_store %arg7[%c16, %c0_15], %13 {strides = array<i32>} : memref<36x288xf32, #tpu.memory_space<vmem>>, vector<4x288xf32>,
    %c0_16 = arith.constant 0 : index
    %c0_17 = arith.constant 0 : index
    %c20 = arith.constant 20 : index
    %15 = vector.load %arg1[%c0_16, %c0_17, %c20] : memref<1x4x342xf32, #tpu.memory_space<vmem>>, vector<1x4x288xf32>
    %16 = vector.shape_cast %15 : vector<1x4x288xf32> to vector<4x288xf32>
    %c20_18 = arith.constant 20 : index
    %c0_19 = arith.constant 0 : index
    %17 = vector.load %arg7[%c20_18, %c0_19] : memref<36x288xf32, #tpu.memory_space<vmem>>, vector<4x288xf32>
    tpu.vector_store %arg7[%c20_18, %c0_19], %16 {strides = array<i32>} : memref<36x288xf32, #tpu.memory_space<vmem>>, vector<4x288xf32>,
    %c0_20 = arith.constant 0 : index
    %c0_21 = arith.constant 0 : index
    %c36 = arith.constant 36 : index
    %18 = vector.load %arg1[%c0_20, %c0_21, %c36] : memref<1x4x342xf32, #tpu.memory_space<vmem>>, vector<1x4x288xf32>
    %19 = vector.shape_cast %18 : vector<1x4x288xf32> to vector<4x288xf32>
    %c24 = arith.constant 24 : index
    %c0_22 = arith.constant 0 : index
    %20 = vector.load %arg7[%c24, %c0_22] : memref<36x288xf32, #tpu.memory_space<vmem>>, vector<4x288xf32>
    tpu.vector_store %arg7[%c24, %c0_22], %19 {strides = array<i32>} : memref<36x288xf32, #tpu.memory_space<vmem>>, vector<4x288xf32>,
    %c0_23 = arith.constant 0 : index
    %c0_24 = arith.constant 0 : index
    %c37 = arith.constant 37 : index
    %21 = vector.load %arg1[%c0_23, %c0_24, %c37] : memref<1x4x342xf32, #tpu.memory_space<vmem>>, vector<1x4x288xf32>
    %22 = vector.shape_cast %21 : vector<1x4x288xf32> to vector<4x288xf32>
    %c28 = arith.constant 28 : index
    %c0_25 = arith.constant 0 : index
    %23 = vector.load %arg7[%c28, %c0_25] : memref<36x288xf32, #tpu.memory_space<vmem>>, vector<4x288xf32>
    tpu.vector_store %arg7[%c28, %c0_25], %22 {strides = array<i32>} : memref<36x288xf32, #tpu.memory_space<vmem>>, vector<4x288xf32>,
    %c0_26 = arith.constant 0 : index
    %c0_27 = arith.constant 0 : index
    %c38 = arith.constant 38 : index
    %24 = vector.load %arg1[%c0_26, %c0_27, %c38] : memref<1x4x342xf32, #tpu.memory_space<vmem>>, vector<1x4x288xf32>
    %25 = vector.shape_cast %24 : vector<1x4x288xf32> to vector<4x288xf32>
    %c32 = arith.constant 32 : index
    %c0_28 = arith.constant 0 : index
    %26 = vector.load %arg7[%c32, %c0_28] : memref<36x288xf32, #tpu.memory_space<vmem>>, vector<4x288xf32>
    tpu.vector_store %arg7[%c32, %c0_28], %25 {strides = array<i32>} : memref<36x288xf32, #tpu.memory_space<vmem>>, vector<4x288xf32>,
    %c0_29 = arith.constant 0 : index
    %c0_30 = arith.constant 0 : index
    %27 = vector.load %arg2[%c0_29, %c0_30] : memref<8x36xf32, #tpu.memory_space<vmem>>, vector<8x36xf32>
    %c0_31 = arith.constant 0 : index
    %c0_32 = arith.constant 0 : index
    %28 = vector.load %arg7[%c0_31, %c0_32] : memref<36x288xf32, #tpu.memory_space<vmem>>, vector<36x288xf32>
    %cst = arith.constant dense<0.000000e+00> : vector<8x288xf32>
    %29 = tpu.matmul %27, %28, %cst {dimension_numbers = #tpu.dot_dimension_numbers<[1], [0], [0], [1], [0, 0, 1, 1], [], []>} : vector<8x36xf32>, vector<36x288xf32>, vector<8x288xf32> -> vector<8x288xf32>
    %c0_33 = arith.constant 0 : index
    %c0_34 = arith.constant 0 : index
    %30 = vector.load %arg3[%c0_33, %c0_34] : memref<1x288xf32, #tpu.memory_space<vmem>>, vector<1x288xf32>
    %31 = vector.broadcast %30 : vector<1x288xf32> to vector<8x288xf32>
    %32 = arith.mulf %29, %31 : vector<8x288xf32>
    %cst_35 = arith.constant dense<0.000000e+00> : vector<8xf32>
    %33 = vector.multi_reduction <add>, %32, %cst_35 [1] : vector<8x288xf32> to vector<8xf32>
    %34 = vector.shape_cast %33 : vector<8xf32> to vector<8x1xf32>
    %c0_36 = arith.constant 0 : index
    %c0_37 = arith.constant 0 : index
    %c0_38 = arith.constant 0 : index
    %35 = vector.load %arg5[%c0_36, %c0_37, %c0_38] : memref<1x8x1xf32, #tpu.memory_space<vmem>>, vector<1x8x1xf32>
    %36 = vector.shape_cast %35 : vector<1x8x1xf32> to vector<8x1xf32>
    %37 = vector.shape_cast %34 : vector<8x1xf32> to vector<1x8x1xf32>
    tpu.vector_store %arg5[%c0_36, %c0_37, %c0_38], %37 {strides = array<i32>} : memref<1x8x1xf32, #tpu.memory_space<vmem>>, vector<1x8x1xf32>,
    %38 = arith.mulf %32, %32 : vector<8x288xf32>
    %cst_39 = arith.constant dense<0.000000e+00> : vector<8xf32>
    %39 = vector.multi_reduction <add>, %38, %cst_39 [1] : vector<8x288xf32> to vector<8xf32>
    %40 = vector.shape_cast %39 : vector<8xf32> to vector<8x1xf32>
    %c0_40 = arith.constant 0 : index
    %c0_41 = arith.constant 0 : index
    %c0_42 = arith.constant 0 : index
    %41 = vector.load %arg6[%c0_40, %c0_41, %c0_42] : memref<1x8x1xf32, #tpu.memory_space<vmem>>, vector<1x8x1xf32>
    %42 = vector.shape_cast %41 : vector<1x8x1xf32> to vector<8x1xf32>
    %43 = vector.shape_cast %40 : vector<8x1xf32> to vector<1x8x1xf32>
    tpu.vector_store %arg6[%c0_40, %c0_41, %c0_42], %43 {strides = array<i32>} : memref<1x8x1xf32, #tpu.memory_space<vmem>>, vector<1x8x1xf32>,
    %c0_43 = arith.constant 0 : index
    %c0_44 = arith.constant 0 : index
    %c0_45 = arith.constant 0 : index
    %44 = vector.load %arg4[%c0_43, %c0_44, %c0_45] : memref<1x8x288xf32, #tpu.memory_space<vmem>>, vector<1x8x288xf32>
    %45 = vector.shape_cast %44 : vector<1x8x288xf32> to vector<8x288xf32>
    %46 = vector.shape_cast %29 : vector<8x288xf32> to vector<1x8x288xf32>
    tpu.vector_store %arg4[%c0_43, %c0_44, %c0_45], %46 {strides = array<i32>} : memref<1x8x288xf32, #tpu.memory_space<vmem>>, vector<1x8x288xf32>,
    return
  }
  func.func @transform_0(%arg0: i32) -> (i32, i32, i32) {
    %c0_i32 = arith.constant 0 : i32
    %c0_i32_0 = arith.constant 0 : i32
    %c0_i32_1 = arith.constant 0 : i32
    return %arg0, %c0_i32, %c0_i32_0 : i32, i32, i32
  }
  func.func @transform_1(%arg0: i32) -> (i32, i32) {
    %c0_i32 = arith.constant 0 : i32
    %c0_i32_0 = arith.constant 0 : i32
    %c0_i32_1 = arith.constant 0 : i32
    return %c0_i32, %c0_i32_0 : i32, i32
  }
  func.func @transform_2(%arg0: i32) -> (i32, i32) {
    %c0_i32 = arith.constant 0 : i32
    %c0_i32_0 = arith.constant 0 : i32
    %c0_i32_1 = arith.constant 0 : i32
    return %c0_i32, %c0_i32_0 : i32, i32
  }
  func.func @transform_3(%arg0: i32) -> (i32, i32, i32) {
    %c0_i32 = arith.constant 0 : i32
    %c0_i32_0 = arith.constant 0 : i32
    %c0_i32_1 = arith.constant 0 : i32
    return %arg0, %c0_i32, %c0_i32_0 : i32, i32, i32
  }
  func.func @transform_4(%arg0: i32) -> (i32, i32, i32) {
    %c0_i32 = arith.constant 0 : i32
    %c0_i32_0 = arith.constant 0 : i32
    %c0_i32_1 = arith.constant 0 : i32
    return %arg0, %c0_i32, %c0_i32_0 : i32, i32, i32
  }
  func.func @transform_5(%arg0: i32) -> (i32, i32, i32) {
    %c0_i32 = arith.constant 0 : i32
    %c0_i32_0 = arith.constant 0 : i32
    %c0_i32_1 = arith.constant 0 : i32
    return %arg0, %c0_i32, %c0_i32_0 : i32, i32, i32
  }
}

</mosaic_0001>

<llo_original>
// kernel: conv_block2_forward.3
$region0: #{conv_block2_forward.3}
  #allocation0 [shape = 'u32[]', space=smem, size = 0x4, offset = 0x4, fixed_abs, tag = 'smem constant byte address 0x4 - core index']
  #allocation1 [shape = 'u32[72,128]{1,0:T(1,128)}', space=vmem, size = 0x9000, scoped, tag = 'internal scratch']
  %s0 = inlined_call_operand.vmem [shape: f32[2,8,288], index: 0, kind: input, shape index: {}]
  %s1 = inlined_call_operand.vmem [shape: f32[8,1], index: 1, kind: input, shape index: {}]
  %s2 = inlined_call_operand.vmem [shape: f32[8,1], index: 2, kind: input, shape index: {}]
  %s3 = inlined_call_operand.vmem [shape: f32[2,8,288], index: 3, kind: output, shape index: {}]
  %s4 = sld [smem:[#allocation0]]
  $region45: #{conv_block2_forward.3} parent=0
    _
  %s6 = ssub.s32 1, %s4
  %s7 = scalar_select 0, %s6, %s4
  loop: start=0, step=1, limit=4
  $region2: #{conv_block2_forward.3} parent=0 // loop_pre_header
    _
  $region3: #{conv_block2_forward.3} parent=0 // loop_header
    %s9 = sphi 0, %s13
    %p10 = scmp.ge.s32.totalorder %s9, 4
    %s19 = sphi 0, %s21
    %s22 = sphi 0, %s19
    %s23 = sphi 0, %s22
    %s39 = sphi 0, %s23
    %s43 = sphi 0, %s43
    %s45 = sphi 0, %s43
    %s46 = sphi 0, %s45
    %s60 = sphi 0, %s46
    %s64 = sphi 0, %s64
    %s66 = sphi 0, %s64
    %s67 = sphi 0, %s66
    %s81 = sphi 0, %s67
    %s87 = sphi 0, %s89
    %s90 = sphi 0, %s87
    %s91 = sphi 0, %s90
    %s107 = sphi 0, %s91
  $region4: #{conv_block2_forward.3} parent=0 // loop_header_branch
    %12 = sbr.rel (%p10) target = $region8
  $region5: #{conv_block2_forward.3} parent=0 // loop_body
    %s14 = ssub.s32 %s9, 1
    %s15 = ssub.s32 %s9, 2
    %s16 = sadd.s32 %s9, 1
    %s17 = ssub.s32 %s9, %s16
    %p18 = scmp.eq.s32.totalorder %s17, 0
    %s20 = sadd.s32 %s19, 1
    %s21 = scalar_select %p18, %s19, %s20
    %p24 = pneg %p18
    %p25 = scmp.eq.s32.totalorder %s9, 1
    %p26 = por %p24, %p25
    %p27 = scmp.ne.s32.totalorder %s19, %s22
    %p28 = scmp.eq.s32.totalorder %s9, 0
    %p29 = por %p27, %p28
    %p30 = scmp.ne.s32.totalorder %s19, %s22
    %p31 = scmp.eq.s32.totalorder %s14, 1
    %p32 = por %p30, %p31
    %p33 = scmp.ne.s32.totalorder %s22, %s23
    %p34 = scmp.eq.s32.totalorder %s14, 0
    %p35 = por %p33, %p34
    %p36 = scmp.ne.s32.totalorder %s22, %s23
    %p37 = scmp.eq.s32.totalorder %s15, 1
    %p38 = por %p36, %p37
    %p40 = scmp.ne.s32.totalorder %s23, %s39
    %p41 = scmp.eq.s32.totalorder %s15, 0
    %p42 = por %p40, %p41
    %s44 = sadd.s32 %s43, 1
    %p47 = scmp.eq.s32.totalorder %s9, 1
    %p48 = scmp.ne.s32.totalorder %s43, %s45
    %p49 = scmp.eq.s32.totalorder %s9, 0
    %p50 = por %p48, %p49
    %p51 = scmp.ne.s32.totalorder %s43, %s45
    %p52 = scmp.eq.s32.totalorder %s14, 1
    %p53 = por %p51, %p52
    %p54 = scmp.ne.s32.totalorder %s45, %s46
    %p55 = scmp.eq.s32.totalorder %s14, 0
    %p56 = por %p54, %p55
    %p57 = scmp.ne.s32.totalorder %s45, %s46
    %p58 = scmp.eq.s32.totalorder %s15, 1
    %p59 = por %p57, %p58
    %p61 = scmp.ne.s32.totalorder %s46, %s60
    %p62 = scmp.eq.s32.totalorder %s15, 0
    %p63 = por %p61, %p62
    %s65 = sadd.s32 %s64, 1
    %p68 = scmp.eq.s32.totalorder %s9, 1
    %p69 = scmp.ne.s32.totalorder %s64, %s66
    %p70 = scmp.eq.s32.totalorder %s9, 0
    %p71 = por %p69, %p70
    %p72 = scmp.ne.s32.totalorder %s64, %s66
    %p73 = scmp.eq.s32.totalorder %s14, 1
    %p74 = por %p72, %p73
    %p75 = scmp.ne.s32.totalorder %s66, %s67
    %p76 = scmp.eq.s32.totalorder %s14, 0
    %p77 = por %p75, %p76
    %p78 = scmp.ne.s32.totalorder %s66, %s67
    %p79 = scmp.eq.s32.totalorder %s15, 1
    %p80 = por %p78, %p79
    %p82 = scmp.ne.s32.totalorder %s67, %s81
    %p83 = scmp.eq.s32.totalorder %s15, 0
    %p84 = por %p82, %p83
    %s85 = ssub.s32 %s9, %s16
    %p86 = scmp.eq.s32.totalorder %s85, 0
    %s88 = sadd.s32 %s87, 1
    %s89 = scalar_select %p86, %s87, %s88
    %p92 = pneg %p86
    %p93 = scmp.eq.s32.totalorder %s9, 1
    %p94 = por %p92, %p93
    %p95 = scmp.ne.s32.totalorder %s87, %s90
    %p96 = scmp.eq.s32.totalorder %s9, 0
    %p97 = por %p95, %p96
    %p98 = scmp.ne.s32.totalorder %s87, %s90
    %p99 = scmp.eq.s32.totalorder %s14, 1
    %p100 = por %p98, %p99
    %p101 = scmp.ne.s32.totalorder %s90, %s91
    %p102 = scmp.eq.s32.totalorder %s14, 0
    %p103 = por %p101, %p102
    %p104 = scmp.ne.s32.totalorder %s90, %s91
    %p105 = scmp.eq.s32.totalorder %s15, 1
    %p106 = por %p104, %p105
    %p108 = scmp.ne.s32.totalorder %s91, %s107
    %p109 = scmp.eq.s32.totalorder %s15, 0
    %p110 = por %p108, %p109
    %p111 = scmp.le.s32.totalorder 1, %s9
    %p112 = scmp.lt.s32.totalorder %s9, 3
    %p113 = pnand %p111, %p112
    %p114 = pneg %p113
    // Predicated region
    $region9: #{conv_block2_forward.3} parent=5 // pred_check
      _
    $region10: #{conv_block2_forward.3} parent=5 // pred_check_branch
      %116 = sbr.rel (%p113) target = $region12
    $region11: #{conv_block2_forward.3} parent=5 // pred_region
      %s117 = ssub.s32 %s9, 1
      // Predicated region
      $region13: #{conv_block2_forward.3} parent=11 // pred_check
        %p118 = pneg %p56
      $region14: #{conv_block2_forward.3} parent=11 // pred_check_branch
        %120 = sbr.rel (%p118) target = $region16
      $region15: #{conv_block2_forward.3} parent=11 // pred_region
        _
      $region16: #{conv_block2_forward.3} parent=11 // pred_fallthru
        _
      // Predicated region
      $region17: #{conv_block2_forward.3} parent=11 // pred_check
        %p121 = pneg %p77
      $region18: #{conv_block2_forward.3} parent=11 // pred_check_branch
        %123 = sbr.rel (%p121) target = $region20
      $region19: #{conv_block2_forward.3} parent=11 // pred_region
        _
      $region20: #{conv_block2_forward.3} parent=11 // pred_fallthru
        _
    $region12: #{conv_block2_forward.3} parent=5 // pred_fallthru
      _
    %p124 = scmp.lt.s32.totalorder %s9, 2
    // Predicated region
    $region21: #{conv_block2_forward.3} parent=5 // pred_check
      %p125 = pneg %p124
    $region22: #{conv_block2_forward.3} parent=5 // pred_check_branch
      %127 = sbr.rel (%p125) target = $region24
    $region23: #{conv_block2_forward.3} parent=5 // pred_region
      // Predicated region
      $region25: #{conv_block2_forward.3} parent=23 // pred_check
        %p128 = pneg %p29
      $region26: #{conv_block2_forward.3} parent=23 // pred_check_branch
        %130 = sbr.rel (%p128) target = $region28
      $region27: #{conv_block2_forward.3} parent=23 // pred_region
        %p131 = scmp.lt.s32.totalorder %s9, 1
        %s132 = scalar_select %p131, %s9, 1
        %s133 = smul.addr %s132, 3
        %s134 = smul.addr %s133, 8
        %s135 = scalar_lea.vmem %s0, %s134
      $region28: #{conv_block2_forward.3} parent=23 // pred_fallthru
        _
    $region24: #{conv_block2_forward.3} parent=5 // pred_fallthru
      _
    %p136 = scmp.le.s32.totalorder 1, %s9
    %p137 = scmp.lt.s32.totalorder %s9, 3
    %p138 = pnand %p136, %p137
    %p139 = pneg %p138
    // Predicated region
    $region29: #{conv_block2_forward.3} parent=5 // pred_check
      _
    $region30: #{conv_block2_forward.3} parent=5 // pred_check_branch
      %141 = sbr.rel (%p138) target = $region32
    $region31: #{conv_block2_forward.3} parent=5 // pred_region
      %s142 = ssub.s32 %s9, 1
      %p143 = scmp.lt.s32.totalorder %s14, 1
      %s144 = scalar_select %p143, %s14, 1
      %s145 = smul.addr %s144, 3
      %s146 = smul.addr %s145, 8
      %s147 = scalar_lea.vmem %s0, %s146
      %p148 = pneg %p35
      %p149 = pneg %p32
      %p150 = pneg %p56
      %p151 = pneg %p53
      %p152 = pneg %p77
      %p153 = pneg %p74
      %p154 = pneg %p103
      %p155 = pneg %p100
      %p156 = scmp.lt.s32.totalorder %s14, 1
      %s157 = scalar_select %p156, %s14, 1
      %s158 = smul.addr %s157, 3
      %s159 = smul.addr %s158, 8
      %s160 = scalar_lea.vmem %s3, %s159
      %p161 = scmp.lt.s32.totalorder %s14, 1
      %s162 = scalar_select %p161, %s14, 1
      %s163 = smul.addr %s162, 3
      %s164 = smul.addr %s163, 8
      %s165 = scalar_lea.vmem %s0, %s164
      %p166 = scmp.lt.s32.totalorder %s14, 1
      %s167 = scalar_select %p166, %s14, 1
      %s168 = smul.addr %s167, 3
      %s169 = smul.addr %s168, 8
      %s170 = scalar_lea.vmem %s3, %s169
      %v171 = vld [vmem:[%s165] sm:$0xff]
      %v172 = vld [vmem:[%s165 + $0x8] sm:$0xff]
      %v173 = vld [vmem:[%s165 + $0x10] sm:$0xff]
      %v174 = vld [vmem:[%s1] sm:$0xff]
      %176 = vset.pattern.permute.xlu0 0
      %177 = vperm.xlu0 %176, %v174
      %v178 = vpop.permute.xlu0 %177
      %v180 = vmul.f32 %v171, %v178
      %v181 = vmul.f32 %v172, %v178
      %v182 = vmul.f32 %v173, %v178
      %v183 = vld [vmem:[%s2] sm:$0xff]
      %185 = vset.pattern.permute.xlu0 0
      %186 = vperm.xlu0 %185, %v183
      %v187 = vpop.permute.xlu0 %186
      %v189 = vadd.f32 %v180, %v187
      %v190 = vadd.f32 %v181, %v187
      %v191 = vadd.f32 %v182, %v187
      %v192 = vmul.f32 %v189, 0.2
      %v193 = vmul.f32 %v190, 0.2
      %v194 = vmul.f32 %v191, 0.2
      %v195 = vmax.f32 %v189, %v192
      %v196 = vmax.f32 %v190, %v193
      %v197 = vmax.f32 %v191, %v194
      %198 = vst [vmem:[%s170] sm:$0xff] %v195
      %199 = vst [vmem:[%s170 + $0x8] sm:$0xff] %v196
      %vm200 = vcmask 261120
      %201 = vst.msk [vmem:[%s170 + $0x10] sm:$0xff] %vm200, %v197
      %p202 = scmp.lt.s32.totalorder %s14, 1
      %s203 = scalar_select %p202, %s14, 1
      %s204 = smul.addr %s203, 3
      %s205 = smul.addr %s204, 8
      %s206 = scalar_lea.vmem %s3, %s205
      // Predicated region
      $region33: #{conv_block2_forward.3} parent=31 // pred_check
        %p207 = pneg %p100
      $region34: #{conv_block2_forward.3} parent=31 // pred_check_branch
        %209 = sbr.rel (%p207) target = $region36
      $region35: #{conv_block2_forward.3} parent=31 // pred_region
        _
      $region36: #{conv_block2_forward.3} parent=31 // pred_fallthru
        _
    $region32: #{conv_block2_forward.3} parent=5 // pred_fallthru
      _
    %p210 = scmp.le.s32.totalorder 2, %s9
    // Predicated region
    $region37: #{conv_block2_forward.3} parent=5 // pred_check
      %p211 = pneg %p210
    $region38: #{conv_block2_forward.3} parent=5 // pred_check_branch
      %213 = sbr.rel (%p211) target = $region40
    $region39: #{conv_block2_forward.3} parent=5 // pred_region
      %s214 = ssub.s32 %s9, 2
      // Predicated region
      $region41: #{conv_block2_forward.3} parent=39 // pred_check
        %p215 = pneg %p106
      $region42: #{conv_block2_forward.3} parent=39 // pred_check_branch
        %217 = sbr.rel (%p215) target = $region44
      $region43: #{conv_block2_forward.3} parent=39 // pred_region
        %p218 = scmp.lt.s32.totalorder %s15, 1
        %s219 = scalar_select %p218, %s15, 1
        %s220 = smul.addr %s219, 3
        %s221 = smul.addr %s220, 8
        %s222 = scalar_lea.vmem %s3, %s221
      $region44: #{conv_block2_forward.3} parent=39 // pred_fallthru
        _
    $region40: #{conv_block2_forward.3} parent=5 // pred_fallthru
      _
  $region6: #{conv_block2_forward.3} parent=0 // loop_footer
    %s13 = sadd.s32 1, %s9
  $region7: #{conv_block2_forward.3} parent=0 // loop_footer_branch
    %8 = sbr.rel target = $region3
  $region8: #{conv_block2_forward.3} parent=0 // loop_exit
    _

// kernel: conv_block2_forward.2
$region0: #{conv_block2_forward.2}
  #allocation0 [shape = 'u32[]', space=smem, size = 0x4, offset = 0x4, fixed_abs, tag = 'smem constant byte address 0x4 - core index']
  #allocation1 [shape = 'u32[72,128]{1,0:T(1,128)}', space=vmem, size = 0x9000, scoped, tag = 'internal scratch']
  #allocation2 [shape = 'f32[36,288]{1,0:T(8,128)}', space=vmem, size = 0xf000, scoped, tag = 'scratch operand']
  %s0 = inlined_call_operand.vmem [shape: f32[2,4,342], index: 0, kind: input, shape index: {}]
  %s1 = inlined_call_operand.vmem [shape: f32[8,36], index: 1, kind: input, shape index: {}]
  %s2 = inlined_call_operand.vmem [shape: f32[1,288], index: 2, kind: input, shape index: {}]
  %s3 = inlined_call_operand.vmem [shape: f32[2,8,288], index: 3, kind: output, shape index: {0}]
  %s4 = inlined_call_operand.vmem [shape: f32[2,8,1], index: 4, kind: output, shape index: {1}]
  %s5 = inlined_call_operand.vmem [shape: f32[2,8,1], index: 5, kind: output, shape index: {2}]
  %6 = xla_tuple %s3, %s4, %s5
  %s7 = sld [smem:[#allocation0]]
  $region61: #{conv_block2_forward.2} parent=0
    _
  %s9 = ssub.s32 1, %s7
  %s10 = scalar_select 0, %s9, %s7
  loop: start=0, step=1, limit=4
  $region2: #{conv_block2_forward.2} parent=0 // loop_pre_header
    _
  $region3: #{conv_block2_forward.2} parent=0 // loop_header
    %s12 = sphi 0, %s16
    %p13 = scmp.ge.s32.totalorder %s12, 4
    %s22 = sphi 0, %s24
    %s25 = sphi 0, %s22
    %s26 = sphi 0, %s25
    %s42 = sphi 0, %s26
    %s46 = sphi 0, %s46
    %s48 = sphi 0, %s46
    %s49 = sphi 0, %s48
    %s63 = sphi 0, %s49
    %s67 = sphi 0, %s67
    %s69 = sphi 0, %s67
    %s70 = sphi 0, %s69
    %s84 = sphi 0, %s70
    %s90 = sphi 0, %s92
    %s93 = sphi 0, %s90
    %s94 = sphi 0, %s93
    %s110 = sphi 0, %s94
    %s116 = sphi 0, %s118
    %s119 = sphi 0, %s116
    %s120 = sphi 0, %s119
    %s136 = sphi 0, %s120
    %s142 = sphi 0, %s144
    %s145 = sphi 0, %s142
    %s146 = sphi 0, %s145
    %s162 = sphi 0, %s146
  $region4: #{conv_block2_forward.2} parent=0 // loop_header_branch
    %15 = sbr.rel (%p13) target = $region8
  $region5: #{conv_block2_forward.2} parent=0 // loop_body
    %s17 = ssub.s32 %s12, 1
    %s18 = ssub.s32 %s12, 2
    %s19 = sadd.s32 %s12, 1
    %s20 = ssub.s32 %s12, %s19
    %p21 = scmp.eq.s32.totalorder %s20, 0
    %s23 = sadd.s32 %s22, 1
    %s24 = scalar_select %p21, %s22, %s23
    %p27 = pneg %p21
    %p28 = scmp.eq.s32.totalorder %s12, 1
    %p29 = por %p27, %p28
    %p30 = scmp.ne.s32.totalorder %s22, %s25
    %p31 = scmp.eq.s32.totalorder %s12, 0
    %p32 = por %p30, %p31
    %p33 = scmp.ne.s32.totalorder %s22, %s25
    %p34 = scmp.eq.s32.totalorder %s17, 1
    %p35 = por %p33, %p34
    %p36 = scmp.ne.s32.totalorder %s25, %s26
    %p37 = scmp.eq.s32.totalorder %s17, 0
    %p38 = por %p36, %p37
    %p39 = scmp.ne.s32.totalorder %s25, %s26
    %p40 = scmp.eq.s32.totalorder %s18, 1
    %p41 = por %p39, %p40
    %p43 = scmp.ne.s32.totalorder %s26, %s42
    %p44 = scmp.eq.s32.totalorder %s18, 0
    %p45 = por %p43, %p44
    %s47 = sadd.s32 %s46, 1
    %p50 = scmp.eq.s32.totalorder %s12, 1
    %p51 = scmp.ne.s32.totalorder %s46, %s48
    %p52 = scmp.eq.s32.totalorder %s12, 0
    %p53 = por %p51, %p52
    %p54 = scmp.ne.s32.totalorder %s46, %s48
    %p55 = scmp.eq.s32.totalorder %s17, 1
    %p56 = por %p54, %p55
    %p57 = scmp.ne.s32.totalorder %s48, %s49
    %p58 = scmp.eq.s32.totalorder %s17, 0
    %p59 = por %p57, %p58
    %p60 = scmp.ne.s32.totalorder %s48, %s49
    %p61 = scmp.eq.s32.totalorder %s18, 1
    %p62 = por %p60, %p61
    %p64 = scmp.ne.s32.totalorder %s49, %s63
    %p65 = scmp.eq.s32.totalorder %s18, 0
    %p66 = por %p64, %p65
    %s68 = sadd.s32 %s67, 1
    %p71 = scmp.eq.s32.totalorder %s12, 1
    %p72 = scmp.ne.s32.totalorder %s67, %s69
    %p73 = scmp.eq.s32.totalorder %s12, 0
    %p74 = por %p72, %p73
    %p75 = scmp.ne.s32.totalorder %s67, %s69
    %p76 = scmp.eq.s32.totalorder %s17, 1
    %p77 = por %p75, %p76
    %p78 = scmp.ne.s32.totalorder %s69, %s70
    %p79 = scmp.eq.s32.totalorder %s17, 0
    %p80 = por %p78, %p79
    %p81 = scmp.ne.s32.totalorder %s69, %s70
    %p82 = scmp.eq.s32.totalorder %s18, 1
    %p83 = por %p81, %p82
    %p85 = scmp.ne.s32.totalorder %s70, %s84
    %p86 = scmp.eq.s32.totalorder %s18, 0
    %p87 = por %p85, %p86
    %s88 = ssub.s32 %s12, %s19
    %p89 = scmp.eq.s32.totalorder %s88, 0
    %s91 = sadd.s32 %s90, 1
    %s92 = scalar_select %p89, %s90, %s91
    %p95 = pneg %p89
    %p96 = scmp.eq.s32.totalorder %s12, 1
    %p97 = por %p95, %p96
    %p98 = scmp.ne.s32.totalorder %s90, %s93
    %p99 = scmp.eq.s32.totalorder %s12, 0
    %p100 = por %p98, %p99
    %p101 = scmp.ne.s32.totalorder %s90, %s93
    %p102 = scmp.eq.s32.totalorder %s17, 1
    %p103 = por %p101, %p102
    %p104 = scmp.ne.s32.totalorder %s93, %s94
    %p105 = scmp.eq.s32.totalorder %s17, 0
    %p106 = por %p104, %p105
    %p107 = scmp.ne.s32.totalorder %s93, %s94
    %p108 = scmp.eq.s32.totalorder %s18, 1
    %p109 = por %p107, %p108
    %p111 = scmp.ne.s32.totalorder %s94, %s110
    %p112 = scmp.eq.s32.totalorder %s18, 0
    %p113 = por %p111, %p112
    %s114 = ssub.s32 %s12, %s19
    %p115 = scmp.eq.s32.totalorder %s114, 0
    %s117 = sadd.s32 %s116, 1
    %s118 = scalar_select %p115, %s116, %s117
    %p121 = pneg %p115
    %p122 = scmp.eq.s32.totalorder %s12, 1
    %p123 = por %p121, %p122
    %p124 = scmp.ne.s32.totalorder %s116, %s119
    %p125 = scmp.eq.s32.totalorder %s12, 0
    %p126 = por %p124, %p125
    %p127 = scmp.ne.s32.totalorder %s116, %s119
    %p128 = scmp.eq.s32.totalorder %s17, 1
    %p129 = por %p127, %p128
    %p130 = scmp.ne.s32.totalorder %s119, %s120
    %p131 = scmp.eq.s32.totalorder %s17, 0
    %p132 = por %p130, %p131
    %p133 = scmp.ne.s32.totalorder %s119, %s120
    %p134 = scmp.eq.s32.totalorder %s18, 1
    %p135 = por %p133, %p134
    %p137 = scmp.ne.s32.totalorder %s120, %s136
    %p138 = scmp.eq.s32.totalorder %s18, 0
    %p139 = por %p137, %p138
    %s140 = ssub.s32 %s12, %s19
    %p141 = scmp.eq.s32.totalorder %s140, 0
    %s143 = sadd.s32 %s142, 1
    %s144 = scalar_select %p141, %s142, %s143
    %p147 = pneg %p141
    %p148 = scmp.eq.s32.totalorder %s12, 1
    %p149 = por %p147, %p148
    %p150 = scmp.ne.s32.totalorder %s142, %s145
    %p151 = scmp.eq.s32.totalorder %s12, 0
    %p152 = por %p150, %p151
    %p153 = scmp.ne.s32.totalorder %s142, %s145
    %p154 = scmp.eq.s32.totalorder %s17, 1
    %p155 = por %p153, %p154
    %p156 = scmp.ne.s32.totalorder %s145, %s146
    %p157 = scmp.eq.s32.totalorder %s17, 0
    %p158 = por %p156, %p157
    %p159 = scmp.ne.s32.totalorder %s145, %s146
    %p160 = scmp.eq.s32.totalorder %s18, 1
    %p161 = por %p159, %p160
    %p163 = scmp.ne.s32.totalorder %s146, %s162
    %p164 = scmp.eq.s32.totalorder %s18, 0
    %p165 = por %p163, %p164
    %p166 = scmp.le.s32.totalorder 1, %s12
    %p167 = scmp.lt.s32.totalorder %s12, 3
    %p168 = pnand %p166, %p167
    %p169 = pneg %p168
    // Predicated region
    $region9: #{conv_block2_forward.2} parent=5 // pred_check
      _
    $region10: #{conv_block2_forward.2} parent=5 // pred_check_branch
      %171 = sbr.rel (%p168) target = $region12
    $region11: #{conv_block2_forward.2} parent=5 // pred_region
      %s172 = ssub.s32 %s12, 1
      // Predicated region
      $region13: #{conv_block2_forward.2} parent=11 // pred_check
        %p173 = pneg %p59
      $region14: #{conv_block2_forward.2} parent=11 // pred_check_branch
        %175 = sbr.rel (%p173) target = $region16
      $region15: #{conv_block2_forward.2} parent=11 // pred_region
        _
      $region16: #{conv_block2_forward.2} parent=11 // pred_fallthru
        _
      // Predicated region
      $region17: #{conv_block2_forward.2} parent=11 // pred_check
        %p176 = pneg %p80
      $region18: #{conv_block2_forward.2} parent=11 // pred_check_branch
        %178 = sbr.rel (%p176) target = $region20
      $region19: #{conv_block2_forward.2} parent=11 // pred_region
        _
      $region20: #{conv_block2_forward.2} parent=11 // pred_fallthru
        _
    $region12: #{conv_block2_forward.2} parent=5 // pred_fallthru
      _
    %p179 = scmp.lt.s32.totalorder %s12, 2
    // Predicated region
    $region21: #{conv_block2_forward.2} parent=5 // pred_check
      %p180 = pneg %p179
    $region22: #{conv_block2_forward.2} parent=5 // pred_check_branch
      %182 = sbr.rel (%p180) target = $region24
    $region23: #{conv_block2_forward.2} parent=5 // pred_region
      // Predicated region
      $region25: #{conv_block2_forward.2} parent=23 // pred_check
        %p183 = pneg %p32
      $region26: #{conv_block2_forward.2} parent=23 // pred_check_branch
        %185 = sbr.rel (%p183) target = $region28
      $region27: #{conv_block2_forward.2} parent=23 // pred_region
        %p186 = scmp.lt.s32.totalorder %s12, 1
        %s187 = scalar_select %p186, %s12, 1
        %s188 = smul.addr %s187, 3
        %s189 = smul.addr %s188, 4
        %s190 = scalar_lea.vmem %s0, %s189
      $region28: #{conv_block2_forward.2} parent=23 // pred_fallthru
        _
    $region24: #{conv_block2_forward.2} parent=5 // pred_fallthru
      _
    %p191 = scmp.le.s32.totalorder 1, %s12
    %p192 = scmp.lt.s32.totalorder %s12, 3
    %p193 = pnand %p191, %p192
    %p194 = pneg %p193
    // Predicated region
    $region29: #{conv_block2_forward.2} parent=5 // pred_check
      _
    $region30: #{conv_block2_forward.2} parent=5 // pred_check_branch
      %196 = sbr.rel (%p193) target = $region32
    $region31: #{conv_block2_forward.2} parent=5 // pred_region
      %s197 = ssub.s32 %s12, 1
      %p198 = scmp.lt.s32.totalorder %s17, 1
      %s199 = scalar_select %p198, %s17, 1
      %s200 = smul.addr %s199, 3
      %s201 = smul.addr %s200, 4
      %s202 = scalar_lea.vmem %s0, %s201
      %p203 = pneg %p38
      %p204 = pneg %p35
      %p205 = pneg %p59
      %p206 = pneg %p56
      %p207 = pneg %p80
      %p208 = pneg %p77
      %p209 = pneg %p106
      %p210 = pneg %p103
      %p211 = scmp.lt.s32.totalorder %s17, 1
      %s212 = scalar_select %p211, %s17, 1
      %s213 = smul.addr %s212, 3
      %s214 = smul.addr %s213, 8
      %s215 = scalar_lea.vmem %s3, %s214
      %p216 = pneg %p132
      %p217 = pneg %p129
      %p218 = scmp.lt.s32.totalorder %s17, 1
      %s219 = scalar_select %p218, %s17, 1
      %s220 = smul.addr %s219, 8
      %s221 = scalar_lea.vmem %s4, %s220
      %p222 = pneg %p158
      %p223 = pneg %p155
      %p224 = scmp.lt.s32.totalorder %s17, 1
      %s225 = scalar_select %p224, %s17, 1
      %s226 = smul.addr %s225, 8
      %s227 = scalar_lea.vmem %s5, %s226
      %p228 = scmp.lt.s32.totalorder %s17, 1
      %s229 = scalar_select %p228, %s17, 1
      %s230 = smul.addr %s229, 3
      %s231 = smul.addr %s230, 4
      %s232 = scalar_lea.vmem %s0, %s231
      %p233 = scmp.lt.s32.totalorder %s17, 1
      %s234 = scalar_select %p233, %s17, 1
      %s235 = smul.addr %s234, 3
      %s236 = smul.addr %s235, 8
      %s237 = scalar_lea.vmem %s3, %s236
      %p238 = scmp.lt.s32.totalorder %s17, 1
      %s239 = scalar_select %p238, %s17, 1
      %s240 = smul.addr %s239, 8
      %s241 = scalar_lea.vmem %s4, %s240
      %p242 = scmp.lt.s32.totalorder %s17, 1
      %s243 = scalar_select %p242, %s17, 1
      %s244 = smul.addr %s243, 8
      %s245 = scalar_lea.vmem %s5, %s244
      %v246 = vld [vmem:[%s232] sm:$0xff]
      %v247 = vld [vmem:[%s232 + $0x8] sm:$0xf]
      %250 = vst [vmem:[#allocation1] ss:$2 sm:$0xff] %v246
      %s251 = scalar_lea.vmem [#allocation1], 16
      %252 = vst [vmem:[%s251] ss:$2 sm:$0xff] %v247
      %v253 = vld.sshfl [vmem:[#allocation1] sm:$0xff pattern:$0x75316420]
      %v254 = vld.sshfl [vmem:[#allocation1 + $0x8] sm:$0xff pattern:$0x75316420]
      %v255 = vld.sshfl [vmem:[#allocation1 + $0x10] sm:$0xff pattern:$0x75316420]
      %259 = vst [vmem:[#allocation2] sm:$0xf] %v253
      %260 = vst [vmem:[#allocation2 + $0x8] sm:$0xf] %v254
      %vm261 = vcmask 257024
      %262 = vst.msk [vmem:[#allocation2 + $0x10] sm:$0xf] %vm261, %v255
      %v263 = vld [vmem:[%s232] sm:$0xff]
      %v264 = vld [vmem:[%s232 + $0x8] sm:$0xf]
      %s267 = scalar_lea.vmem [#allocation1], 1
      %268 = vst [vmem:[%s267] ss:$2 sm:$0xff] %v263
      %s269 = scalar_lea.vmem [#allocation1], 17
      %270 = vst [vmem:[%s269] ss:$2 sm:$0xff] %v264
      %v271 = vld.sshfl [vmem:[#allocation1] sm:$0xff pattern:$0x75316420]
      %v272 = vld.sshfl [vmem:[#allocation1 + $0x8] sm:$0xff pattern:$0x75316420]
      %v273 = vld.sshfl [vmem:[#allocation1 + $0x10] sm:$0xff pattern:$0x75316420]
      %274 = vrot.lane.b32.xlu0 %v271, 127
      %v275 = vpop.permute.xlu0 %274
      %276 = vrot.lane.b32.xlu0 %v272, 127
      %v277 = vpop.permute.xlu0 %276
      %278 = vrot.lane.b32.xlu0 %v273, 127
      %v279 = vpop.permute.xlu0 %278
      %vm280 = vcmask 1039360
      %v281 = vsel %vm280, %v275, %v277
      %v282 = vsel %vm280, %v277, %v279
      %286 = vst [vmem:[#allocation2] sm:$0xf0] %v281
      %287 = vst [vmem:[#allocation2 + $0x8] sm:$0xf0] %v282
      %vm288 = vcmask 261124
      %289 = vst.msk [vmem:[#allocation2 + $0x10] sm:$0xf0] %vm288, %v279
      %v290 = vld [vmem:[%s232] sm:$0xff]
      %v291 = vld [vmem:[%s232 + $0x8] sm:$0xf]
      %294 = vst [vmem:[#allocation1] ss:$2 sm:$0xff] %v290
      %s295 = scalar_lea.vmem [#allocation1], 16
      %296 = vst [vmem:[%s295] ss:$2 sm:$0xff] %v291
      %v297 = vld.sshfl [vmem:[#allocation1] sm:$0xff pattern:$0x75316420]
      %v298 = vld.sshfl [vmem:[#allocation1 + $0x8] sm:$0xff pattern:$0x75316420]
      %v299 = vld.sshfl [vmem:[#allocation1 + $0x10] sm:$0xff pattern:$0x75316420]
      %300 = vrot.lane.b32.xlu0 %v297, 126
      %v301 = vpop.permute.xlu0 %300
      %302 = vrot.lane.b32.xlu0 %v298, 126
      %v303 = vpop.permute.xlu0 %302
      %304 = vrot.lane.b32.xlu0 %v299, 126
      %v305 = vpop.permute.xlu0 %304
      %vm306 = vcmask 1031168
      %v307 = vsel %vm306, %v301, %v303
      %v308 = vsel %vm306, %v303, %v305
      %312 = vst [vmem:[#allocation2 + $0x18] sm:$0xf] %v307
      %313 = vst [vmem:[#allocation2 + $0x20] sm:$0xf] %v308
      %314 = vst.msk [vmem:[#allocation2 + $0x28] sm:$0xf] %vm261, %v305
      %v315 = vld [vmem:[%s232] sm:$0xff]
      %v316 = vld [vmem:[%s232 + $0x8] sm:$0xf]
      %s319 = scalar_lea.vmem [#allocation1], 1
      %320 = vst [vmem:[%s319] ss:$2 sm:$0xff] %v315
      %s321 = scalar_lea.vmem [#allocation1], 17
      %322 = vst [vmem:[%s321] ss:$2 sm:$0xff] %v316
      %v323 = vld.sshfl [vmem:[#allocation1] sm:$0xff pattern:$0x75316420]
      %v324 = vld.sshfl [vmem:[#allocation1 + $0x8] sm:$0xff pattern:$0x75316420]
      %v325 = vld.sshfl [vmem:[#allocation1 + $0x10] sm:$0xff pattern:$0x75316420]
      %326 = vrot.lane.b32.xlu0 %v323, 110
      %v327 = vpop.permute.xlu0 %326
      %328 = vrot.lane.b32.xlu0 %v324, 110
      %v329 = vpop.permute.xlu0 %328
      %330 = vrot.lane.b32.xlu0 %v325, 110
      %v331 = vpop.permute.xlu0 %330
      %vm332 = vcmask 900096
      %v333 = vsel %vm332, %v327, %v329
      %v334 = vsel %vm332, %v329, %v331
      %338 = vst [vmem:[#allocation2 + $0x18] sm:$0xf0] %v333
      %339 = vst [vmem:[#allocation2 + $0x20] sm:$0xf0] %v334
      %340 = vst.msk [vmem:[#allocation2 + $0x28] sm:$0xf0] %vm288, %v331
      %v341 = vld [vmem:[%s232] sm:$0xff]
      %v342 = vld [vmem:[%s232 + $0x8] sm:$0xf]
      %345 = vst [vmem:[#allocation1] ss:$2 sm:$0xff] %v341
      %s346 = scalar_lea.vmem [#allocation1], 16
      %347 = vst [vmem:[%s346] ss:$2 sm:$0xff] %v342
      %v348 = vld.sshfl [vmem:[#allocation1] sm:$0xff pattern:$0x75316420]
      %v349 = vld.sshfl [vmem:[#allocation1 + $0x8] sm:$0xff pattern:$0x75316420]
      %v350 = vld.sshfl [vmem:[#allocation1 + $0x10] sm:$0xff pattern:$0x75316420]
      %351 = vrot.lane.b32.xlu0 %v348, 109
      %v352 = vpop.permute.xlu0 %351
      %353 = vrot.lane.b32.xlu0 %v349, 109
      %v354 = vpop.permute.xlu0 %353
      %355 = vrot.lane.b32.xlu0 %v350, 109
      %v356 = vpop.permute.xlu0 %355
      %vm357 = vcmask 891904
      %v358 = vsel %vm357, %v352, %v354
      %v359 = vsel %vm357, %v354, %v356
      %363 = vst [vmem:[#allocation2 + $0x30] sm:$0xf] %v358
      %364 = vst [vmem:[#allocation2 + $0x38] sm:$0xf] %v359
      %365 = vst.msk [vmem:[#allocation2 + $0x40] sm:$0xf] %vm261, %v356
      %v366 = vld [vmem:[%s232] sm:$0xff]
      %v367 = vld [vmem:[%s232 + $0x8] sm:$0xf]
      %s370 = scalar_lea.vmem [#allocation1], 1
      %371 = vst [vmem:[%s370] ss:$2 sm:$0xff] %v366
      %s372 = scalar_lea.vmem [#allocation1], 17
      %373 = vst [vmem:[%s372] ss:$2 sm:$0xff] %v367
      %v374 = vld.sshfl [vmem:[#allocation1] sm:$0xff pattern:$0x75316420]
      %v375 = vld.sshfl [vmem:[#allocation1 + $0x8] sm:$0xff pattern:$0x75316420]
      %v376 = vld.sshfl [vmem:[#allocation1 + $0x10] sm:$0xff pattern:$0x75316420]
      %377 = vrot.lane.b32.xlu0 %v374, 108
      %v378 = vpop.permute.xlu0 %377
      %379 = vrot.lane.b32.xlu0 %v375, 108
      %v380 = vpop.permute.xlu0 %379
      %381 = vrot.lane.b32.xlu0 %v376, 108
      %v382 = vpop.permute.xlu0 %381
      %vm383 = vcmask 883712
      %v384 = vsel %vm383, %v378, %v380
      %v385 = vsel %vm383, %v380, %v382
      %389 = vst [vmem:[#allocation2 + $0x30] sm:$0xf0] %v384
      %390 = vst [vmem:[#allocation2 + $0x38] sm:$0xf0] %v385
      %391 = vst.msk [vmem:[#allocation2 + $0x40] sm:$0xf0] %vm288, %v382
      %v392 = vld [vmem:[%s232] sm:$0xff]
      %v393 = vld [vmem:[%s232 + $0x8] sm:$0xf]
      %396 = vst [vmem:[#allocation1] ss:$2 sm:$0xff] %v392
      %s397 = scalar_lea.vmem [#allocation1], 16
      %398 = vst [vmem:[%s397] ss:$2 sm:$0xff] %v393
      %v399 = vld.sshfl [vmem:[#allocation1] sm:$0xff pattern:$0x75316420]
      %v400 = vld.sshfl [vmem:[#allocation1 + $0x8] sm:$0xff pattern:$0x75316420]
      %v401 = vld.sshfl [vmem:[#allocation1 + $0x10] sm:$0xff pattern:$0x75316420]
      %402 = vrot.lane.b32.xlu0 %v399, 92
      %v403 = vpop.permute.xlu0 %402
      %404 = vrot.lane.b32.xlu0 %v400, 92
      %v405 = vpop.permute.xlu0 %404
      %406 = vrot.lane.b32.xlu0 %v401, 92
      %v407 = vpop.permute.xlu0 %406
      %vm408 = vcmask 752640
      %v409 = vsel %vm408, %v403, %v405
      %v410 = vsel %vm408, %v405, %v407
      %414 = vst [vmem:[#allocation2 + $0x48] sm:$0xf] %v409
      %415 = vst [vmem:[#allocation2 + $0x50] sm:$0xf] %v410
      %416 = vst.msk [vmem:[#allocation2 + $0x58] sm:$0xf] %vm261, %v407
      %v417 = vld [vmem:[%s232] sm:$0xff]
      %v418 = vld [vmem:[%s232 + $0x8] sm:$0xf]
      %s421 = scalar_lea.vmem [#allocation1], 1
      %422 = vst [vmem:[%s421] ss:$2 sm:$0xff] %v417
      %s423 = scalar_lea.vmem [#allocation1], 17
      %424 = vst [vmem:[%s423] ss:$2 sm:$0xff] %v418
      %v425 = vld.sshfl [vmem:[#allocation1] sm:$0xff pattern:$0x75316420]
      %v426 = vld.sshfl [vmem:[#allocation1 + $0x8] sm:$0xff pattern:$0x75316420]
      %v427 = vld.sshfl [vmem:[#allocation1 + $0x10] sm:$0xff pattern:$0x75316420]
      %428 = vrot.lane.b32.xlu0 %v425, 91
      %v429 = vpop.permute.xlu0 %428
      %430 = vrot.lane.b32.xlu0 %v426, 91
      %v431 = vpop.permute.xlu0 %430
      %432 = vrot.lane.b32.xlu0 %v427, 91
      %v433 = vpop.permute.xlu0 %432
      %vm434 = vcmask 744448
      %v435 = vsel %vm434, %v429, %v431
      %v436 = vsel %vm434, %v431, %v433
      %440 = vst [vmem:[#allocation2 + $0x48] sm:$0xf0] %v435
      %441 = vst [vmem:[#allocation2 + $0x50] sm:$0xf0] %v436
      %442 = vst.msk [vmem:[#allocation2 + $0x58] sm:$0xf0] %vm288, %v433
      %v443 = vld [vmem:[%s232] sm:$0xff]
      %v444 = vld [vmem:[%s232 + $0x8] sm:$0xf]
      %447 = vst [vmem:[#allocation1] ss:$2 sm:$0xff] %v443
      %s448 = scalar_lea.vmem [#allocation1], 16
      %449 = vst [vmem:[%s448] ss:$2 sm:$0xff] %v444
      %v450 = vld.sshfl [vmem:[#allocation1] sm:$0xff pattern:$0x75316420]
      %v451 = vld.sshfl [vmem:[#allocation1 + $0x8] sm:$0xff pattern:$0x75316420]
      %v452 = vld.sshfl [vmem:[#allocation1 + $0x10] sm:$0xff pattern:$0x75316420]
      %453 = vrot.lane.b32.xlu0 %v450, 90
      %v454 = vpop.permute.xlu0 %453
      %455 = vrot.lane.b32.xlu0 %v451, 90
      %v456 = vpop.permute.xlu0 %455
      %457 = vrot.lane.b32.xlu0 %v452, 90
      %v458 = vpop.permute.xlu0 %457
      %vm459 = vcmask 736256
      %v460 = vsel %vm459, %v454, %v456
      %v461 = vsel %vm459, %v456, %v458
      %465 = vst [vmem:[#allocation2 + $0x60] sm:$0xf] %v460
      %466 = vst [vmem:[#allocation2 + $0x68] sm:$0xf] %v461
      %467 = vst.msk [vmem:[#allocation2 + $0x70] sm:$0xf] %vm261, %v458
      %v468 = vld [vmem:[%s1] sm:$0xff]
      %v469 = vld [vmem:[#allocation2] sm:$0xff]
      %v470 = vld [vmem:[#allocation2 + $0x8] sm:$0xff]
      %v471 = vld [vmem:[#allocation2 + $0x10] sm:$0xff]
      %v472 = vld [vmem:[#allocation2 + $0x18] sm:$0xff]
      %v473 = vld [vmem:[#allocation2 + $0x20] sm:$0xff]
      %v474 = vld [vmem:[#allocation2 + $0x28] sm:$0xff]
      %v475 = vld [vmem:[#allocation2 + $0x30] sm:$0xff]
      %v476 = vld [vmem:[#allocation2 + $0x38] sm:$0xff]
      %v477 = vld [vmem:[#allocation2 + $0x40] sm:$0xff]
      %v478 = vld [vmem:[#allocation2 + $0x48] sm:$0xff]
      %v479 = vld [vmem:[#allocation2 + $0x50] sm:$0xff]
      %v480 = vld [vmem:[#allocation2 + $0x58] sm:$0xff]
      %v481 = vld [vmem:[#allocation2 + $0x60] sm:$0xf]
      %v482 = vld [vmem:[#allocation2 + $0x68] sm:$0xf]
      %v483 = vld [vmem:[#allocation2 + $0x70] sm:$0xf]
      %vm484 = vcmask 293888
      %v486 = vsel %vm484, %v468, 0
      %vm488 = vcmask 1043456
      %v490 = vsel %vm488, %v481, 0
      %v493 = vsel %vm488, %v482, 0
      %v496 = vsel %vm488, %v483, 0
      %498 = vmatpush.msra.mxu0 0.0
      %499 = vmatpush.msra.mxu0 0.0
      %500 = vmatpush.msra.mxu0 0.0
      %501 = vmatpush.msra.mxu0 0.0
      %502 = vmatpush.msra.mxu0 0.0
      %503 = vmatpush.msra.mxu0 0.0
      %504 = vmatpush.msra.mxu0 0.0
      %505 = vmatpush.msra.mxu0 0.0
      %506 = vmatpush.msra.mxu0 0.0
      %507 = vmatpush.msra.mxu0 0.0
      %508 = vmatpush.msra.mxu0 0.0
      %509 = vmatpush.msra.mxu0 %v490
      %510 = vmatpush.msra.mxu0 %v478
      %511 = vmatpush.msra.mxu0 %v475
      %512 = vmatpush.msra.mxu0 %v472
      %513 = vmatpush.msra.mxu0 %v469
      %514 = vmatmul.f32.gmra.mxu0 %v486
      %v515 = vpop.f32.mrf.mxu0
      %v516 = vadd.f32 0.0, %v515
      %517 = vdwg.mxu0
      %518 = vmatpush.msra.mxu0 0.0
      %519 = vmatpush.msra.mxu0 0.0
      %520 = vmatpush.msra.mxu0 0.0
      %521 = vmatpush.msra.mxu0 0.0
      %522 = vmatpush.msra.mxu0 0.0
      %523 = vmatpush.msra.mxu0 0.0
      %524 = vmatpush.msra.mxu0 0.0
      %525 = vmatpush.msra.mxu0 0.0
      %526 = vmatpush.msra.mxu0 0.0
      %527 = vmatpush.msra.mxu0 0.0
      %528 = vmatpush.msra.mxu0 0.0
      %529 = vmatpush.msra.mxu0 %v493
      %530 = vmatpush.msra.mxu0 %v479
      %531 = vmatpush.msra.mxu0 %v476
      %532 = vmatpush.msra.mxu0 %v473
      %533 = vmatpush.msra.mxu0 %v470
      %534 = vmatmul.f32.gmra.mxu0 %v486
      %v535 = vpop.f32.mrf.mxu0
      %v536 = vadd.f32 0.0, %v535
      %537 = vdwg.mxu0
      %538 = vmatpush.msra.mxu0 0.0
      %539 = vmatpush.msra.mxu0 0.0
      %540 = vmatpush.msra.mxu0 0.0
      %541 = vmatpush.msra.mxu0 0.0
      %542 = vmatpush.msra.mxu0 0.0
      %543 = vmatpush.msra.mxu0 0.0
      %544 = vmatpush.msra.mxu0 0.0
      %545 = vmatpush.msra.mxu0 0.0
      %546 = vmatpush.msra.mxu0 0.0
      %547 = vmatpush.msra.mxu0 0.0
      %548 = vmatpush.msra.mxu0 0.0
      %549 = vmatpush.msra.mxu0 %v496
      %550 = vmatpush.msra.mxu0 %v480
      %551 = vmatpush.msra.mxu0 %v477
      %552 = vmatpush.msra.mxu0 %v474
      %553 = vmatpush.msra.mxu0 %v471
      %554 = vmatmul.f32.gmra.mxu0 %v486
      %v555 = vpop.f32.mrf.mxu0
      %v556 = vadd.f32 0.0, %v555
      %557 = vdwg.mxu0
      %v558 = vld [vmem:[%s2] sm:$0x7]
      %v560 = vperm.slane %v558, 0
      %v561 = vperm.slane %v558, 1
      %v562 = vperm.slane %v558, 2
      %v566 = vmul.f32 %v516, %v560
      %v567 = vmul.f32 %v536, %v561
      %v568 = vmul.f32 %v556, %v562
      %v569 = vadd.f32 %v566, %v567
      %vm570 = vcmask 261120
      %v571 = vsel %vm570, %v568, 0.0
      %v572 = vadd.f32 %v569, %v571
      %573 = vadd.xlane.f32.xlu0 %v572
      %v574 = vpop.xlane.xlu0 %573
      %vm575 = vcmask 7168
      %576 = vst.msk [vmem:[%s241] sm:$0xff] %vm575, %v574
      %v577 = vmul.f32 %v566, %v566
      %v578 = vmul.f32 %v567, %v567
      %v579 = vmul.f32 %v568, %v568
      %v580 = vadd.f32 %v577, %v578
      %v581 = vsel %vm570, %v579, 0.0
      %v582 = vadd.f32 %v580, %v581
      %583 = vadd.xlane.f32.xlu0 %v582
      %v584 = vpop.xlane.xlu0 %583
      %585 = vst.msk [vmem:[%s245] sm:$0xff] %vm575, %v584
      %586 = vst [vmem:[%s237] sm:$0xff] %v516
      %587 = vst [vmem:[%s237 + $0x8] sm:$0xff] %v536
      %588 = vst.msk [vmem:[%s237 + $0x10] sm:$0xff] %vm570, %v556
      %p589 = scmp.lt.s32.totalorder %s17, 1
      %s590 = scalar_select %p589, %s17, 1
      %s591 = smul.addr %s590, 3
      %s592 = smul.addr %s591, 8
      %s593 = scalar_lea.vmem %s3, %s592
      %p594 = scmp.lt.s32.totalorder %s17, 1
      %s595 = scalar_select %p594, %s17, 1
      %s596 = smul.addr %s595, 8
      %s597 = scalar_lea.vmem %s4, %s596
      %p598 = scmp.lt.s32.totalorder %s17, 1
      %s599 = scalar_select %p598, %s17, 1
      %s600 = smul.addr %s599, 8
      %s601 = scalar_lea.vmem %s5, %s600
      // Predicated region
      $region33: #{conv_block2_forward.2} parent=31 // pred_check
        %p602 = pneg %p103
      $region34: #{conv_block2_forward.2} parent=31 // pred_check_branch
        %604 = sbr.rel (%p602) target = $region36
      $region35: #{conv_block2_forward.2} parent=31 // pred_region
        _
      $region36: #{conv_block2_forward.2} parent=31 // pred_fallthru
        _
      // Predicated region
      $region37: #{conv_block2_forward.2} parent=31 // pred_check
        %p605 = pneg %p129
      $region38: #{conv_block2_forward.2} parent=31 // pred_check_branch
        %607 = sbr.rel (%p605) target = $region40
      $region39: #{conv_block2_forward.2} parent=31 // pred_region
        _
      $region40: #{conv_block2_forward.2} parent=31 // pred_fallthru
        _
      // Predicated region
      $region41: #{conv_block2_forward.2} parent=31 // pred_check
        %p608 = pneg %p155
      $region42: #{conv_block2_forward.2} parent=31 // pred_check_branch
        %610 = sbr.rel (%p608) target = $region44
      $region43: #{conv_block2_forward.2} parent=31 // pred_region
        _
      $region44: #{conv_block2_forward.2} parent=31 // pred_fallthru
        _
    $region32: #{conv_block2_forward.2} parent=5 // pred_fallthru
      _
    %p611 = scmp.le.s32.totalorder 2, %s12
    // Predicated region
    $region45: #{conv_block2_forward.2} parent=5 // pred_check
      %p612 = pneg %p611
    $region46: #{conv_block2_forward.2} parent=5 // pred_check_branch
      %614 = sbr.rel (%p612) target = $region48
    $region47: #{conv_block2_forward.2} parent=5 // pred_region
      %s615 = ssub.s32 %s12, 2
      // Predicated region
      $region49: #{conv_block2_forward.2} parent=47 // pred_check
        %p616 = pneg %p109
      $region50: #{conv_block2_forward.2} parent=47 // pred_check_branch
        %618 = sbr.rel (%p616) target = $region52
      $region51: #{conv_block2_forward.2} parent=47 // pred_region
        %p619 = scmp.lt.s32.totalorder %s18, 1
        %s620 = scalar_select %p619, %s18, 1
        %s621 = smul.addr %s620, 3
        %s622 = smul.addr %s621, 8
        %s623 = scalar_lea.vmem %s3, %s622
      $region52: #{conv_block2_forward.2} parent=47 // pred_fallthru
        _
      // Predicated region
      $region53: #{conv_block2_forward.2} parent=47 // pred_check
        %p624 = pneg %p135
      $region54: #{conv_block2_forward.2} parent=47 // pred_check_branch
        %626 = sbr.rel (%p624) target = $region56
      $region55: #{conv_block2_forward.2} parent=47 // pred_region
        %p627 = scmp.lt.s32.totalorder %s18, 1
        %s628 = scalar_select %p627, %s18, 1
        %s629 = smul.addr %s628, 8
        %s630 = scalar_lea.vmem %s4, %s629
      $region56: #{conv_block2_forward.2} parent=47 // pred_fallthru
        _
      // Predicated region
      $region57: #{conv_block2_forward.2} parent=47 // pred_check
        %p631 = pneg %p161
      $region58: #{conv_block2_forward.2} parent=47 // pred_check_branch
        %633 = sbr.rel (%p631) target = $region60
      $region59: #{conv_block2_forward.2} parent=47 // pred_region
        %p634 = scmp.lt.s32.totalorder %s18, 1
        %s635 = scalar_select %p634, %s18, 1
        %s636 = smul.addr %s635, 8
        %s637 = scalar_lea.vmem %s5, %s636
      $region60: #{conv_block2_forward.2} parent=47 // pred_fallthru
        _
    $region48: #{conv_block2_forward.2} parent=5 // pred_fallthru
      _
  $region6: #{conv_block2_forward.2} parent=0 // loop_footer
    %s16 = sadd.s32 1, %s12
  $region7: #{conv_block2_forward.2} parent=0 // loop_footer_branch
    %11 = sbr.rel target = $region3
  $region8: #{conv_block2_forward.2} parent=0 // loop_exit
    _

</llo_original>
